<compile_context>
chip_gen: v5e
topology: v5e:2x2
jax: 0.10.0
libtpu: 0.0.40
codegen_flags: <defaults>
</compile_context>

<pallas_src>
import functools
import math
from dataclasses import dataclass
from typing import Optional

import jax
import jax.numpy as jnp
from jax.experimental import pallas as pl
from jax.experimental.pallas import tpu as pltpu


# ----------------------------------------------------------------------------- config ---
def find_multiple(n: int, k: int) -> int:
    if n % k == 0:
        return n
    return n + k - n % k


@dataclass
class ModelArgs:
    block_size: int = 2048
    vocab_size: int = 32000
    n_layer: int = 32
    n_head: int = 32
    dim: int = 4096
    intermediate_size: Optional[int] = None
    n_local_heads: int = -1
    head_dim: int = 64
    rope_base: float = 10000.0
    norm_eps: float = 1e-5
    rope_scaling: Optional[dict] = None
    semi_compiled_model: bool = False

    def __post_init__(self):
        if self.n_local_heads == -1:
            self.n_local_heads = self.n_head
        if self.intermediate_size is None:
            hidden_dim = 4 * self.dim
            n_hidden = int(2 * hidden_dim / 3)
            self.intermediate_size = find_multiple(n_hidden, 256)
        self.head_dim = self.dim // self.n_head


# --------------------------------------------------------------------- hardware profile ---
@functools.lru_cache(maxsize=1)
def _hw_profile():
    """Per-generation tile / VMEM-limit tuning.

    v5e/v6e expose 128 MiB VMEM -> big tiles + ~100 MiB scoped limit.
    v7x (or unknown) has only 64 MiB physical -> conservative 50 MiB limit with headroom.
    """
    vmem_bytes = 64 * 1024 * 1024
    try:
        info = pltpu.get_tpu_info()
        v = getattr(info, "vmem_capacity_bytes", None)
        if v:
            vmem_bytes = int(v)
    except Exception:
        pass
    if vmem_bytes >= 128 * 1024 * 1024:  # v5e / v6e
        return dict(
            vmem_limit=100 * 1024 * 1024,
            tile_m=1024, tile_n=2048, tile_k=4096,
            ffn_tile_m=512, ffn_tile_i=1024,
            norm_tile_m=512,
            attn_tile_q=512, attn_tile_kv=512,
        )
    # v7x / unknown: 64 MiB physical VMEM -> leave headroom for compiler scratch.
    return dict(
        vmem_limit=50 * 1024 * 1024,
        tile_m=512, tile_n=1024, tile_k=4096,
        ffn_tile_m=256, ffn_tile_i=512,
        norm_tile_m=256,
        attn_tile_q=256, attn_tile_kv=512,
    )


def _choose_tile(dim: int, target: int, multiple: int) -> int:
    """Largest multiple-of-`multiple` divisor of `dim` that is <= target, else full dim.

    Guarantees the chosen tile divides `dim` exactly and satisfies the TPU (8,128)
    block-shape rule (either a multiple of `multiple`, or equal to the full dim).
    NOTE: for dims like intermediate=11008 or vocab=32000 this silently picks a smaller
    tile than the target (e.g. 256 / 1280) - still correct, just fewer lanes per step."""
    if dim <= target:
        return dim
    t = (target // multiple) * multiple
    while t >= multiple:
        if dim % t == 0:
            return t
        t -= multiple
    return dim


# ---------------------------------------------------------------------- Pallas kernels ---
def _rmsnorm_kernel(x_ref, w_ref, norm_ref, *, eps):
    # Plain RMSNorm (layer 0 of the ladder: previous outputs are zero, so no add needed).
    x = x_ref[...].astype(jnp.float32)
    var = jnp.mean(x * x, axis=-1, keepdims=True)
    y = x * jax.lax.rsqrt(var + eps)
    norm_ref[...] = (y * w_ref[...].astype(jnp.float32)).astype(norm_ref.dtype)


def _add_rmsnorm_kernel(x_ref, p_ref, w_ref, res_ref, norm_ref, *, eps):
    # Fused ladder step: residual = residual + previous_out ; normed = rmsnorm(residual).
    x = x_ref[...].astype(jnp.float32) + p_ref[...].astype(jnp.float32)
    res_ref[...] = x.astype(res_ref.dtype)
    var = jnp.mean(x * x, axis=-1, keepdims=True)
    y = x * jax.lax.rsqrt(var + eps)
    norm_ref[...] = (y * w_ref[...].astype(jnp.float32)).astype(norm_ref.dtype)


def _add2_rmsnorm_kernel(x_ref, a_ref, b_ref, w_ref, norm_ref, *, eps):
    # Final: x + previous_attention_out + previous_mlp_out, then rmsnorm.
    x = (x_ref[...].astype(jnp.float32)
         + a_ref[...].astype(jnp.float32)
         + b_ref[...].astype(jnp.float32))
    var = jnp.mean(x * x, axis=-1, keepdims=True)
    y = x * jax.lax.rsqrt(var + eps)
    norm_ref[...] = (y * w_ref[...].astype(jnp.float32)).astype(norm_ref.dtype)


def _matmul_kernel_single(x_ref, w_ref, o_ref):
    # Single K step (tk == Din): no accumulator scratch, no init/finalize branches.
    o_ref[...] = jnp.dot(
        x_ref[...].astype(jnp.bfloat16), w_ref[...],
        preferred_element_type=jnp.float32,
    ).astype(o_ref.dtype)


def _matmul_kernel_acc(x_ref, w_ref, o_ref, acc_ref):
    # Tiled y = x @ W_t with f32 accumulation over the K grid axis.
    @pl.when(pl.program_id(2) == 0)
    def _():
        acc_ref[...] = jnp.zeros_like(acc_ref)

    acc_ref[...] += jnp.dot(
        x_ref[...].astype(jnp.bfloat16), w_ref[...],
        preferred_element_type=jnp.float32,
    )

    @pl.when(pl.program_id(2) == pl.num_programs(2) - 1)
    def _():
        o_ref[...] = acc_ref[...].astype(o_ref.dtype)


def _ffn_kernel(x_ref, w1_ref, w3_ref, w2_ref, o_ref, acc_ref):
    # SwiGLU MLP tiled over the intermediate dim: the wide activation never leaves VMEM.
    k = pl.program_id(1)

    @pl.when(k == 0)
    def _():
        acc_ref[...] = jnp.zeros_like(acc_ref)

    x = x_ref[...].astype(jnp.bfloat16)
    h1 = jnp.dot(x, w1_ref[...], preferred_element_type=jnp.float32)
    h3 = jnp.dot(x, w3_ref[...], preferred_element_type=jnp.float32)
    h = (h1 * jax.nn.sigmoid(h1)) * h3
    acc_ref[...] += jnp.dot(
        h.astype(jnp.bfloat16), w2_ref[...], preferred_element_type=jnp.float32
    )

    @pl.when(k == pl.num_programs(1) - 1)
    def _():
        o_ref[...] = acc_ref[...].astype(o_ref.dtype)


def _flash_attn_kernel(q_ref, k_ref, v_ref, cq_ref, sq_ref, ck_ref, sk_ref,
                       o_ref, m_sc, l_sc, acc_sc, *, tq, tkv, hd):
    # Flash-style attention with RoPE fused in.  q/k/v tiles are column slices of the qkv
    # projection output (GQA handled by the BlockSpec index_map).  The 1/sqrt(hd) scale is
    # folded into cq/sq.  Causal blocks fully above the diagonal skip all compute.
    ki = pl.program_id(3)

    @pl.when(ki == 0)
    def _init():
        m_sc[...] = jnp.full((tq, 1), -1e30, jnp.float32)
        l_sc[...] = jnp.zeros((tq, 1), jnp.float32)
        acc_sc[...] = jnp.zeros((tq, hd), jnp.float32)

    q_start = pl.program_id(2) * tq
    k_start = ki * tkv

    @pl.when(k_start <= q_start + (tq - 1))      # skip fully-masked (above-diagonal) blocks
    def _compute():
        half = hd // 2
        # RoPE in split-half layout: rotated = x*cos + roll(x, hd//2)*sin_signed.
        qx = q_ref[...].astype(jnp.float32)
        kx = k_ref[...].astype(jnp.float32)
        q = qx * cq_ref[...] + pltpu.roll(qx, half, 1) * sq_ref[...]   # scale folded in
        k = kx * ck_ref[...] + pltpu.roll(kx, half, 1) * sk_ref[...]
        s = jax.lax.dot_general(
            q.astype(jnp.bfloat16), k.astype(jnp.bfloat16),
            (((1,), (1,)), ((), ())), preferred_element_type=jnp.float32,
        )                                        # (tq, tkv)
        row = q_start + jax.lax.broadcasted_iota(jnp.int32, (tq, tkv), 0)
        col = k_start + jax.lax.broadcasted_iota(jnp.int32, (tq, tkv), 1)
        s = jnp.where(row >= col, s, -1e30)
        m_prev = m_sc[...]
        m_new = jnp.maximum(m_prev, jnp.max(s, axis=-1, keepdims=True))
        alpha = jnp.exp(m_prev - m_new)
        p = jnp.exp(s - m_new)
        l_sc[...] = alpha * l_sc[...] + jnp.sum(p, axis=-1, keepdims=True)
        acc_sc[...] = alpha * acc_sc[...] + jnp.dot(
            p.astype(jnp.bfloat16), v_ref[...].astype(jnp.bfloat16),
            preferred_element_type=jnp.float32,
        )
        m_sc[...] = m_new

    @pl.when(ki == pl.num_programs(3) - 1)
    def _finalize():
        o_ref[...] = (acc_sc[...] * pl.reciprocal(l_sc[...], approx=True)
                      ).astype(o_ref.dtype)


# --------------------------------------------------------------------------- wrappers ---
def pallas_rmsnorm(x2d, weight, eps, prof):
    M, D = x2d.shape
    tm = _choose_tile(M, prof["norm_tile_m"], 8)
    return pl.pallas_call(
        functools.partial(_rmsnorm_kernel, eps=eps),
        out_shape=jax.ShapeDtypeStruct((M, D), jnp.bfloat16),
        grid=(M // tm,),
        in_specs=[
            pl.BlockSpec((tm, D), lambda i: (i, 0)),
            pl.BlockSpec((1, D), lambda i: (0, 0)),
        ],
        out_specs=pl.BlockSpec((tm, D), lambda i: (i, 0)),
        compiler_params=pltpu.CompilerParams(
            dimension_semantics=("parallel",), vmem_limit_bytes=prof["vmem_limit"]
        ),
    )(x2d, weight.reshape(1, D))


def pallas_add_rmsnorm(x2d, prev2d, weight, eps, prof):
    # Returns (updated residual f32, normed activation bf16).
    M, D = x2d.shape
    tm = _choose_tile(M, prof["norm_tile_m"], 8)
    return pl.pallas_call(
        functools.partial(_add_rmsnorm_kernel, eps=eps),
        out_shape=(
            jax.ShapeDtypeStruct((M, D), jnp.float32),
            jax.ShapeDtypeStruct((M, D), jnp.bfloat16),
        ),
        grid=(M // tm,),
        in_specs=[
            pl.BlockSpec((tm, D), lambda i: (i, 0)),
            pl.BlockSpec((tm, D), lambda i: (i, 0)),
            pl.BlockSpec((1, D), lambda i: (0, 0)),
        ],
        out_specs=(
            pl.BlockSpec((tm, D), lambda i: (i, 0)),
            pl.BlockSpec((tm, D), lambda i: (i, 0)),
        ),
        compiler_params=pltpu.CompilerParams(
            dimension_semantics=("parallel",), vmem_limit_bytes=prof["vmem_limit"]
        ),
    )(x2d, prev2d, weight.reshape(1, D))


def pallas_add2_rmsnorm(x2d, a2d, b2d, weight, eps, prof):
    M, D = x2d.shape
    tm = _choose_tile(M, prof["norm_tile_m"], 8)
    return pl.pallas_call(
        functools.partial(_add2_rmsnorm_kernel, eps=eps),
        out_shape=jax.ShapeDtypeStruct((M, D), jnp.bfloat16),
        grid=(M // tm,),
        in_specs=[
            pl.BlockSpec((tm, D), lambda i: (i, 0)),
            pl.BlockSpec((tm, D), lambda i: (i, 0)),
            pl.BlockSpec((tm, D), lambda i: (i, 0)),
            pl.BlockSpec((1, D), lambda i: (0, 0)),
        ],
        out_specs=pl.BlockSpec((tm, D), lambda i: (i, 0)),
        compiler_params=pltpu.CompilerParams(
            dimension_semantics=("parallel",), vmem_limit_bytes=prof["vmem_limit"]
        ),
    )(x2d, a2d, b2d, weight.reshape(1, D))


def pallas_linear(x2d, w_t, out_dtype, prof):
    # x2d: (M, Din), w_t: (Din, Dout) bf16 -> (M, Dout) out_dtype
    M, Din = x2d.shape
    Dout = w_t.shape[1]
    tm = _choose_tile(M, prof["tile_m"], 8)
    tn = _choose_tile(Dout, prof["tile_n"], 128)
    tk = _choose_tile(Din, prof["tile_k"], 128)
    # Guard against _choose_tile silently falling back to a huge full dimension.
    blk_bytes = 2 * (tm * tk + tk * tn) * 2 + tm * tn * 8
    assert blk_bytes <= prof["vmem_limit"], f"linear tiles overflow VMEM ({blk_bytes} B)"
    cp = pltpu.CompilerParams(
        dimension_semantics=("parallel", "parallel", "arbitrary"),
        vmem_limit_bytes=prof["vmem_limit"],
    )
    if Din == tk:
        # Whole reduction in one step: drop the K axis and accumulator scratch entirely.
        return pl.pallas_call(
            _matmul_kernel_single,
            out_shape=jax.ShapeDtypeStruct((M, Dout), out_dtype),
            grid=(M // tm, Dout // tn),
            in_specs=[
                pl.BlockSpec((tm, Din), lambda i, j: (i, 0)),
                pl.BlockSpec((Din, tn), lambda i, j: (0, j)),
            ],
            out_specs=pl.BlockSpec((tm, tn), lambda i, j: (i, j)),
            compiler_params=pltpu.CompilerParams(
                dimension_semantics=("parallel", "parallel"),
                vmem_limit_bytes=prof["vmem_limit"],
            ),
        )(x2d, w_t)
    return pl.pallas_call(
        _matmul_kernel_acc,
        out_shape=jax.ShapeDtypeStruct((M, Dout), out_dtype),
        grid=(M // tm, Dout // tn, Din // tk),
        in_specs=[
            pl.BlockSpec((tm, tk), lambda i, j, k: (i, k)),
            pl.BlockSpec((tk, tn), lambda i, j, k: (k, j)),
        ],
        out_specs=pl.BlockSpec((tm, tn), lambda i, j, k: (i, j)),
        scratch_shapes=[pltpu.VMEM((tm, tn), jnp.float32)],
        compiler_params=cp,
    )(x2d, w_t)


def pallas_ffn(x2d, w1_t, w3_t, w2_t, prof):
    # SwiGLU: w2(silu(w1(x)) * w3(x)), tiled over the intermediate dimension. bf16 output.
    M, D = x2d.shape
    I = w1_t.shape[1]
    tm = _choose_tile(M, prof["ffn_tile_m"], 8)
    ti = _choose_tile(I, prof["ffn_tile_i"], 128)
    return pl.pallas_call(
        _ffn_kernel,
        out_shape=jax.ShapeDtypeStruct((M, D), jnp.bfloat16),
        grid=(M // tm, I // ti),
        in_specs=[
            pl.BlockSpec((tm, D), lambda i, k: (i, 0)),
            pl.BlockSpec((D, ti), lambda i, k: (0, k)),
            pl.BlockSpec((D, ti), lambda i, k: (0, k)),
            pl.BlockSpec((ti, D), lambda i, k: (k, 0)),
        ],
        out_specs=pl.BlockSpec((tm, D), lambda i, k: (i, 0)),
        scratch_shapes=[pltpu.VMEM((tm, D), jnp.float32)],
        compiler_params=pltpu.CompilerParams(
            dimension_semantics=("parallel", "arbitrary"),
            vmem_limit_bytes=prof["vmem_limit"],
        ),
    )(x2d, w1_t, w3_t, w2_t)


def pallas_flash_attention(qkv, rope_q, rope_k, B, S, Hq, Hkv, hd, prof):
    # qkv: (B*S, (Hq+2*Hkv)*hd) bf16 (q/k columns in split-half rope layout).
    # Output: (B*S, Hq*hd) bf16, directly consumable by the wo projection (no transpose).
    assert hd % 128 == 0, "fused flash attention requires head_dim % 128 == 0"
    assert S % 8 == 0
    M = B * S
    rep = Hq // Hkv
    tq = _choose_tile(S, prof["attn_tile_q"], 8)
    tkv = _choose_tile(S, prof["attn_tile_kv"], 8)
    nq, nkv = S // tq, S // tkv
    cos_q, sin_q = rope_q
    cos_k, sin_k = rope_k
    kernel = functools.partial(_flash_attn_kernel, tq=tq, tkv=tkv, hd=hd)
    return pl.pallas_call(
        kernel,
        out_shape=jax.ShapeDtypeStruct((M, Hq * hd), jnp.bfloat16),
        grid=(B, Hq, nq, nkv),
        in_specs=[
            # q / k / v are column slices of the same qkv array (passed three times).
            pl.BlockSpec((tq, hd), lambda b, h, qi, ki: (b * nq + qi, h)),
            pl.BlockSpec((tkv, hd), lambda b, h, qi, ki: (b * nkv + ki, Hq + h // rep)),
            pl.BlockSpec((tkv, hd), lambda b, h, qi, ki: (b * nkv + ki, Hq + Hkv + h // rep)),
            pl.BlockSpec((tq, hd), lambda b, h, qi, ki: (qi, 0)),
            pl.BlockSpec((tq, hd), lambda b, h, qi, ki: (qi, 0)),
            pl.BlockSpec((tkv, hd), lambda b, h, qi, ki: (ki, 0)),
            pl.BlockSpec((tkv, hd), lambda b, h, qi, ki: (ki, 0)),
        ],
        out_specs=pl.BlockSpec((tq, hd), lambda b, h, qi, ki: (b * nq + qi, h)),
        scratch_shapes=[
            pltpu.VMEM((tq, 1), jnp.float32),
            pltpu.VMEM((tq, 1), jnp.float32),
            pltpu.VMEM((tq, hd), jnp.float32),
        ],
        compiler_params=pltpu.CompilerParams(
            dimension_semantics=("parallel", "parallel", "parallel", "arbitrary"),
            vmem_limit_bytes=prof["vmem_limit"],
        ),
    )(qkv, qkv, qkv, cos_q, sin_q, cos_k, sin_k)


# ----------------------------------------------------------------------------- glue ---
def precompute_freqs_cis(seq_len, n_elem, base):
    # TODO(synk): rope_scaling (llama-3.1-405b style) is not applied here.
    freqs = 1.0 / (
        base ** (jnp.arange(0, n_elem, 2)[: n_elem // 2].astype(jnp.float32) / n_elem)
    )
    t = jnp.arange(seq_len, dtype=jnp.float32)
    freqs = jnp.outer(t, freqs)
    return jnp.stack([jnp.cos(freqs), jnp.sin(freqs)], axis=-1)  # (seq, n_elem//2, 2)


def build_rope_tables(freqs_cis, scale):
    # q/k columns are stored in split-half layout (see rope_permute_wqkv), so in-kernel RoPE
    # is   rotated = x * cos_full + roll(x, hd//2) * sin_signed.
    # The 1/sqrt(hd) softmax scale is folded into the q tables (free).
    cos = freqs_cis[..., 0].astype(jnp.float32)                  # (S, hd//2)
    sin = freqs_cis[..., 1].astype(jnp.float32)
    cos_full = jnp.concatenate([cos, cos], axis=-1)              # (S, hd)
    sin_signed = jnp.concatenate([-sin, sin], axis=-1)
    return (cos_full * scale, sin_signed * scale), (cos_full, sin_signed)


def rope_permute_wqkv(wqkv, n_head, n_kv, head_dim):
    # Convert the torch interleaved-rope layout (re, im, re, im, ...) of each q/k head into
    # split-half layout ([re...], [im...]).  Applying the same permutation to q and k leaves
    # q.k^T (hence the attention output) unchanged, and lets the kernel apply RoPE with one
    # pltpu.roll instead of stride-2 lane shuffles.  v columns are untouched.
    din = wqkv.shape[0]
    perm = jnp.concatenate([jnp.arange(0, head_dim, 2), jnp.arange(1, head_dim, 2)])
    q, k, v = jnp.split(wqkv, [n_head * head_dim, (n_head + n_kv) * head_dim], axis=1)

    def p(sec, H):
        return sec.reshape(din, H, head_dim)[:, :, perm].reshape(din, H * head_dim)

    return jnp.concatenate([p(q, n_head), p(k, n_kv), v], axis=1)


def attention_fwd(x2d, lp, rope_q, rope_k, cfg, B, S, prof):
    qkv = pallas_linear(x2d, lp["wqkv"], out_dtype=jnp.bfloat16, prof=prof)
    # TODO(synk): KV-cache update skipped -- for a fresh prefill with input_pos = arange(S)
    # and max_seq_length == S it is semantically a no-op (the in-kernel causal mask matches
    # causal_mask[input_pos] for that case).
    y = pallas_flash_attention(
        qkv, rope_q, rope_k, B, S, cfg.n_head, cfg.n_local_heads, cfg.head_dim, prof
    )                                                            # (M, dim) bf16
    return pallas_linear(y, lp["wo"], out_dtype=jnp.bfloat16, prof=prof)


def gpt_ladder_forward(params, idx, input_pos, cfg, freqs_cis_cache):
    prof = _hw_profile()
    B, S = idx.shape
    scale = 1.0 / math.sqrt(cfg.head_dim)
    freqs_cis = freqs_cis_cache[input_pos]                       # (S, hd//2, 2)
    rope_q, rope_k = build_rope_tables(freqs_cis, scale)

    x = jnp.take(params["tok_emb"], idx, axis=0).reshape(B * S, cfg.dim)  # f32 residual
    prev_attn = None
    prev_mlp = None
    for li, lp in enumerate(params["layers"]):
        # residual = residual + previous_attention_out (fused with attention_norm).
        if li == 0:
            attn_in = pallas_rmsnorm(x, lp["attn_norm"], cfg.norm_eps, prof)
        else:
            x, attn_in = pallas_add_rmsnorm(x, prev_attn, lp["attn_norm"], cfg.norm_eps, prof)
        cur_attn = attention_fwd(attn_in, lp, rope_q, rope_k, cfg, B, S, prof)
        # all_reduce (tp_world_size == 1) -> identity, handle -> no-op.
        if li == 0:
            ffn_in = pallas_rmsnorm(x, lp["ffn_norm"], cfg.norm_eps, prof)
        else:
            x, ffn_in = pallas_add_rmsnorm(x, prev_mlp, lp["ffn_norm"], cfg.norm_eps, prof)
        cur_mlp = pallas_ffn(ffn_in, lp["w1"], lp["w3"], lp["w2"], prof)
        prev_attn, prev_mlp = cur_attn, cur_mlp
    xn = pallas_add2_rmsnorm(x, prev_attn, prev_mlp, params["norm"], cfg.norm_eps, prof)
    logits = pallas_linear(xn, params["output"], out_dtype=jnp.float32, prof=prof)
    return logits.reshape(B, S, -1)


def init_params(cfg, key):
    def lin(k, din, dout):
        # Weights stored transposed (in, out), bf16 for MXU-native matmuls & halved HBM.
        # TODO(synk): optional fp8 weight storage on v7x to further halve weight streaming.
        return (0.02 * jax.random.normal(k, (din, dout), jnp.float32)).astype(jnp.bfloat16)

    keys = jax.random.split(key, 2 + cfg.n_layer)
    params = {
        "tok_emb": 0.02
        * jax.random.normal(keys[0], (cfg.vocab_size, cfg.dim), jnp.float32),
        "output": lin(keys[1], cfg.dim, cfg.vocab_size),
        "norm": jnp.ones((cfg.dim,), jnp.float32),
        "layers": [],
    }
    total_head_dim = (cfg.n_head + 2 * cfg.n_local_heads) * cfg.head_dim
    for i in range(cfg.n_layer):
        lk = jax.random.split(keys[2 + i], 5)
        wqkv = lin(lk[0], cfg.dim, total_head_dim)
        # bake the interleaved->split-half rope column permutation into the stored weight
        wqkv = rope_permute_wqkv(wqkv, cfg.n_head, cfg.n_local_heads, cfg.head_dim)
        params["layers"].append(
            dict(
                wqkv=wqkv,
                wo=lin(lk[1], cfg.dim, cfg.dim),
                w1=lin(lk[2], cfg.dim, cfg.intermediate_size),
                w3=lin(lk[3], cfg.dim, cfg.intermediate_size),
                w2=lin(lk[4], cfg.intermediate_size, cfg.dim),
                attn_norm=jnp.ones((cfg.dim,), jnp.float32),
                ffn_norm=jnp.ones((cfg.dim,), jnp.float32),
            )
        )
    return params


# ----------------------------------------------------------------------------- main ---
if __name__ == "__main__":
    # Small config with head_dim = 128 (the fused flash-attention path requires hd % 128 == 0,
    # matching the 7B/13B/70B/llama-3 family).
    cfg = ModelArgs(
        block_size=32,
        vocab_size=256,
        n_layer=2,
        n_head=4,
        dim=512,
        intermediate_size=1024,
        n_local_heads=2,
    )
    B, S = 2, 8

    key = jax.random.PRNGKey(0)
    pkey, ikey = jax.random.split(key)
    params = init_params(cfg, pkey)

    # setup_caches equivalent (causal mask is generated inside the attention kernel).
    freqs_cis_cache = precompute_freqs_cis(cfg.block_size, cfg.head_dim, cfg.rope_base)

    idx = jax.random.randint(ikey, (B, S), 0, cfg.vocab_size, dtype=jnp.int32)
    input_pos = jnp.arange(S, dtype=jnp.int32)

    logits = gpt_ladder_forward(params, idx, input_pos, cfg, freqs_cis_cache)
    jax.block_until_ready(logits)
    assert logits.shape == (B, S, cfg.vocab_size)
    assert logits.dtype == jnp.float32
    print("KERNEL_OK")
</pallas_src>

<mosaic_0001>
module attributes {stable_mosaic.version = 11 : i64} {
  func.func @_rmsnorm_kernel(%arg0: i32, %arg1: memref<16x512xf32, #tpu.memory_space<vmem>>, %arg2: memref<1x512xf32, #tpu.memory_space<vmem>>, %arg3: memref<16x512xbf16, #tpu.memory_space<vmem>>) attributes {dimension_semantics = [#tpu.dimension_semantics<parallel>], iteration_bounds = array<i64: 1>, scalar_prefetch = 0 : i64, scratch_operands = 0 : i64, tpu.core_type = #tpu.core_type<tc>, window_params = [{transform_indices = @transform_0, window_bounds = array<i64: 16, 512>}, {pipeline_mode = #tpu.pipeline_mode<synchronous>, transform_indices = @transform_1, window_bounds = array<i64: 1, 512>}, {transform_indices = @transform_2, window_bounds = array<i64: 16, 512>}]} {
    %c0 = arith.constant 0 : index
    %c0_0 = arith.constant 0 : index
    %0 = vector.load %arg1[%c0, %c0_0] : memref<16x512xf32, #tpu.memory_space<vmem>>, vector<16x512xf32>
    %1 = arith.mulf %0, %0 : vector<16x512xf32>
    %cst = arith.constant dense<0.000000e+00> : vector<16xf32>
    %2 = vector.multi_reduction <add>, %1, %cst [1] : vector<16x512xf32> to vector<16xf32>
    %3 = vector.shape_cast %2 : vector<16xf32> to vector<16x1xf32>
    %cst_1 = arith.constant 5.120000e+02 : f32
    %4 = vector.broadcast %cst_1 : f32 to vector<16x1xf32>
    %5 = arith.divf %3, %4 : vector<16x1xf32>
    %cst_2 = arith.constant 9.99999974E-6 : f32
    %6 = vector.broadcast %cst_2 : f32 to vector<16x1xf32>
    %7 = arith.addf %5, %6 : vector<16x1xf32>
    %8 = math.rsqrt %7 : vector<16x1xf32>
    %9 = vector.broadcast %8 : vector<16x1xf32> to vector<16x512xf32>
    %10 = arith.mulf %0, %9 : vector<16x512xf32>
    %c0_3 = arith.constant 0 : index
    %c0_4 = arith.constant 0 : index
    %11 = vector.load %arg2[%c0_3, %c0_4] : memref<1x512xf32, #tpu.memory_space<vmem>>, vector<1x512xf32>
    %12 = vector.broadcast %11 : vector<1x512xf32> to vector<16x512xf32>
    %13 = arith.mulf %10, %12 : vector<16x512xf32>
    %14 = arith.truncf %13 : vector<16x512xf32> to vector<16x512xbf16>
    %c0_5 = arith.constant 0 : index
    %c0_6 = arith.constant 0 : index
    %15 = vector.load %arg3[%c0_5, %c0_6] : memref<16x512xbf16, #tpu.memory_space<vmem>>, vector<16x512xbf16>
    tpu.vector_store %arg3[%c0_5, %c0_6], %14 {strides = array<i32>} : memref<16x512xbf16, #tpu.memory_space<vmem>>, vector<16x512xbf16>,
    return
  }
  func.func @transform_0(%arg0: i32) -> (i32, i32) {
    %c0_i32 = arith.constant 0 : i32
    %c0_i32_0 = arith.constant 0 : i32
    return %arg0, %c0_i32 : i32, i32
  }
  func.func @transform_1(%arg0: i32) -> (i32, i32) {
    %c0_i32 = arith.constant 0 : i32
    %c0_i32_0 = arith.constant 0 : i32
    %c0_i32_1 = arith.constant 0 : i32
    return %c0_i32, %c0_i32_0 : i32, i32
  }
  func.func @transform_2(%arg0: i32) -> (i32, i32) {
    %c0_i32 = arith.constant 0 : i32
    %c0_i32_0 = arith.constant 0 : i32
    return %arg0, %c0_i32 : i32, i32
  }
}

</mosaic_0001>

<llo_original>
// kernel: tpu_custom_call.1
$region0: #{tpu_custom_call.1}
  #allocation0 [shape = 'u32[]', space=smem, size = 0x4, offset = 0x4, fixed_abs, tag = 'smem constant byte address 0x4 - core index']
  #allocation1 [shape = 'u32[72,128]{1,0:T(1,128)}', space=vmem, size = 0x9000, scoped, tag = 'internal scratch']
  %s0 = inlined_call_operand.hbm [shape: f32[16,512], index: 0, kind: input, shape index: {}]
  %s1 = inlined_call_operand.hbm [shape: f32[1,512], index: 1, kind: input, shape index: {}]
  %s2 = inlined_call_operand.hbm [shape: bf16[16,512], index: 2, kind: output, shape index: {}]
  %s3 = sld [smem:[#allocation0]]
  $region26: #{tpu_custom_call.1} parent=0
    _
  %s5 = ssub.s32 1, %s3
  %s6 = scalar_select 0, %s5, %s3
  $region1: #{tpu_custom_call.1} parent=0
    #allocation2 [shape = 'u8[32768]{0}', space=vmem, size = 0x8000, scoped, tag = 'input window, operand 0, single buffered']
    #allocation3 [shape = 's32[1]{0}', space=sflag, size = 0x4, scoped, tag = 'scoped memory for tpu_custom_call.1']
    #allocation4 [shape = 's32[1]{0}', space=sflag, size = 0x4, scoped, tag = 'scoped memory for tpu_custom_call.1']
    #allocation5 [shape = 'u8[2048]{0}', space=vmem, size = 0x800, scoped, tag = 'input window, operand 1, single buffered']
    #allocation6 [shape = 's32[1]{0}', space=sflag, size = 0x4, scoped, tag = 'scoped memory for tpu_custom_call.1']
    #allocation7 [shape = 'u8[16384]{0}', space=vmem, size = 0x4000, scoped, tag = 'output window, operand 0, single buffered']
    %7 = vsyncpa [#allocation3], 0
    %8 = vsyncpa [#allocation6], 0
    %9 = vsyncpa [#allocation4], 0
    // Predicated region
    $region2: #{tpu_custom_call.1} parent=1 // pred_check
      _
    $region3: #{tpu_custom_call.1} parent=1 // pred_check_branch
      %11 = sbr.rel (0) target = $region5
    $region4: #{tpu_custom_call.1} parent=1 // pred_region
      %13 = vsyncadd [#allocation3], 0
      %s14 = sshll.u32 %s0, 4
      %s15 = int_to_ptr.hbm [resolvable:$true] %s14
      %s16 = sshll.u32 [#allocation2], 4
      %s17 = int_to_ptr.vmem [resolvable:$true] %s16
      %22 = dma.hbm_to_vmem [thread:$0]  %s15, 1024, %s17, [#allocation3], 512, 512, 32
    $region5: #{tpu_custom_call.1} parent=1 // pred_fallthru
      _
    // Predicated region
    $region6: #{tpu_custom_call.1} parent=1 // pred_check
      _
    $region7: #{tpu_custom_call.1} parent=1 // pred_check_branch
      %24 = sbr.rel (0) target = $region9
    $region8: #{tpu_custom_call.1} parent=1 // pred_region
      %26 = vsyncadd [#allocation6], 0
      %s28 = sshll.u32 %s1, 4
      %s29 = int_to_ptr.hbm [resolvable:$true] %s28
      %s30 = sshll.u32 [#allocation5], 4
      %s31 = int_to_ptr.vmem [resolvable:$true] %s30
      %33 = dma.hbm_to_vmem [thread:$0]  %s29, 64, %s31, [#allocation6]
    $region9: #{tpu_custom_call.1} parent=1 // pred_fallthru
      _
    // Predicated region
    $region10: #{tpu_custom_call.1} parent=1 // pred_check
      _
    $region11: #{tpu_custom_call.1} parent=1 // pred_check_branch
      %35 = sbr.rel (0) target = $region13
    $region12: #{tpu_custom_call.1} parent=1 // pred_region
      %37 = dma.done [#allocation3], 1024
    $region13: #{tpu_custom_call.1} parent=1 // pred_fallthru
      _
    // Predicated region
    $region14: #{tpu_custom_call.1} parent=1 // pred_check
      _
    $region15: #{tpu_custom_call.1} parent=1 // pred_check_branch
      %39 = sbr.rel (0) target = $region17
    $region16: #{tpu_custom_call.1} parent=1 // pred_region
      %41 = dma.done [#allocation6], 64
    $region17: #{tpu_custom_call.1} parent=1 // pred_fallthru
      _
    %v42 = vld [vmem:[#allocation2] sm:$0xff]
    %v43 = vld [vmem:[#allocation2 + $0x8] sm:$0xff]
    %v44 = vld [vmem:[#allocation2 + $0x10] sm:$0xff]
    %v45 = vld [vmem:[#allocation2 + $0x18] sm:$0xff]
    %v46 = vld [vmem:[#allocation2 + $0x20] sm:$0xff]
    %v47 = vld [vmem:[#allocation2 + $0x28] sm:$0xff]
    %v48 = vld [vmem:[#allocation2 + $0x30] sm:$0xff]
    %v49 = vld [vmem:[#allocation2 + $0x38] sm:$0xff]
    %v50 = vmul.f32 %v42, %v42
    %v51 = vmul.f32 %v43, %v43
    %v52 = vmul.f32 %v44, %v44
    %v53 = vmul.f32 %v45, %v45
    %v54 = vmul.f32 %v46, %v46
    %v55 = vmul.f32 %v47, %v47
    %v56 = vmul.f32 %v48, %v48
    %v57 = vmul.f32 %v49, %v49
    %v58 = vadd.f32 %v50, %v51
    %v59 = vadd.f32 %v58, %v52
    %v60 = vadd.f32 %v59, %v53
    %61 = vadd.xlane.f32.xlu0 %v60
    %v62 = vpop.xlane.xlu0 %61
    %v63 = vadd.f32 %v54, %v55
    %v64 = vadd.f32 %v63, %v56
    %v65 = vadd.f32 %v64, %v57
    %66 = vadd.xlane.f32.xlu0 %v65
    %v67 = vpop.xlane.xlu0 %66
    %v68 = vrcp.pop 512.0
    %v69 = vmul.f32 512.0, %v68
    %v70 = vsub.f32 1.0, %v69
    %v71 = vmul.f32 %v68, %v70
    %v72 = vadd.f32 %v68, %v71
    %vm73 = vweird.f32 %v68
    %v74 = vsel %vm73, %v68, %v72
    %v75 = vmul.f32 %v62, %v74
    %v76 = vmul.f32 %v67, %v74
    %v77 = vadd.f32 %v75, 1e-05
    %v78 = vadd.f32 %v76, 1e-05
    %v79 = vrsqrt.pop %v77
    %v80 = vmul.f32 %v79, %v77
    %v81 = vmul.f32 %v80, %v79
    %v82 = vmul.f32 0.5, %v81
    %v83 = vsub.f32 1.5, %v82
    %v84 = vmul.f32 %v79, %v83
    %vm85 = vweird.f32 %v77
    %vm86 = vweird.f32 %v79
    %vm87 = vmor %vm85, %vm86
    %v88 = vsel %vm87, %v79, %v84
    %v89 = vrsqrt.pop %v78
    %v90 = vmul.f32 %v89, %v78
    %v91 = vmul.f32 %v90, %v89
    %v92 = vmul.f32 0.5, %v91
    %v93 = vsub.f32 1.5, %v92
    %v94 = vmul.f32 %v89, %v93
    %vm95 = vweird.f32 %v78
    %vm96 = vweird.f32 %v89
    %vm97 = vmor %vm95, %vm96
    %v98 = vsel %vm97, %v89, %v94
    %v99 = vmul.f32 %v42, %v88
    %v100 = vmul.f32 %v43, %v88
    %v101 = vmul.f32 %v44, %v88
    %v102 = vmul.f32 %v45, %v88
    %v103 = vmul.f32 %v46, %v98
    %v104 = vmul.f32 %v47, %v98
    %v105 = vmul.f32 %v48, %v98
    %v106 = vmul.f32 %v49, %v98
    %v107 = vld [vmem:[#allocation5] sm:$0xf]
    %v109 = vperm.slane %v107, 0
    %v110 = vperm.slane %v107, 1
    %v111 = vperm.slane %v107, 2
    %v112 = vperm.slane %v107, 3
    %v117 = vmul.f32 %v99, %v109
    %v118 = vmul.f32 %v100, %v110
    %v119 = vmul.f32 %v101, %v111
    %v120 = vmul.f32 %v102, %v112
    %v121 = vmul.f32 %v103, %v109
    %v122 = vmul.f32 %v104, %v110
    %v123 = vmul.f32 %v105, %v111
    %v124 = vmul.f32 %v106, %v112
    %v125 = vpack.c.bf16 %v118, %v117
    %v126 = vpack.c.bf16 %v120, %v119
    %v127 = vpack.c.bf16 %v122, %v121
    %v128 = vpack.c.bf16 %v124, %v123
    %129 = vst [vmem:[#allocation7] sm:$0xff] %v125
    %130 = vst [vmem:[#allocation7 + $0x8] sm:$0xff] %v126
    %131 = vst [vmem:[#allocation7 + $0x10] sm:$0xff] %v127
    %132 = vst [vmem:[#allocation7 + $0x18] sm:$0xff] %v128
    // Predicated region
    $region18: #{tpu_custom_call.1} parent=1 // pred_check
      _
    $region19: #{tpu_custom_call.1} parent=1 // pred_check_branch
      %134 = sbr.rel (0) target = $region21
    $region20: #{tpu_custom_call.1} parent=1 // pred_region
      %136 = vsyncadd [#allocation4], 0
      %s137 = sshll.u32 [#allocation7], 4
      %s138 = int_to_ptr.vmem [resolvable:$true] %s137
      %s139 = sshll.u32 %s2, 4
      %s140 = int_to_ptr.hbm [resolvable:$true] %s139
      %145 = dma.vmem_to_hbm [thread:$0]  %s138, 512, %s140, [#allocation4], 256, 256, 16
    $region21: #{tpu_custom_call.1} parent=1 // pred_fallthru
      _
    // Predicated region
    $region22: #{tpu_custom_call.1} parent=1 // pred_check
      _
    $region23: #{tpu_custom_call.1} parent=1 // pred_check_branch
      %147 = sbr.rel (0) target = $region25
    $region24: #{tpu_custom_call.1} parent=1 // pred_region
      %149 = dma.done [#allocation4], 512
    $region25: #{tpu_custom_call.1} parent=1 // pred_fallthru
      _
    %150 = vsyncpa [#allocation3], 1
    %151 = vsyncpa [#allocation6], 1
    %152 = vsyncpa [#allocation4], 1

</llo_original>
